<compile_context>
chip_gen: v6e
topology: v6e:2x2x1
jax: 0.10.0
libtpu: 0.0.40
codegen_flags: <defaults>
</compile_context>

<pallas_src>
import jax
import jax.numpy as jnp
from jax import lax
from jax.experimental import pallas as pl
from jax.experimental.pallas import tpu as pltpu

_LANE = 128
_DEFAULT_MAX_TILE = 64 * 1024            # rows (lane axis) per grid step
_VMEM_INPUT_BUDGET = 6 * 1024 * 1024     # double-buffered input bytes target


def _round_down(x, m):
    return (x // m) * m


def _cdiv(a, b):
    return -(-a // b)


def _choose_tiling(n, o, itemsize, max_tile_rows):
    """Pick the lane-axis tile (rows of the original (N, O) problem)."""
    cap = _VMEM_INPUT_BUDGET // max((o + 1) * itemsize * 2, 1)
    cap = max(_LANE, _round_down(cap, _LANE))
    cap = min(cap, max(_LANE, _round_down(max_tile_rows, _LANE)))
    if n <= cap:
        # Single block whose lane extent equals the full array dim (always legal,
        # no masking needed but the mask is all-true and harmless).
        return n, 1
    return cap, _cdiv(n, cap)


def _make_kernel(n_total, o, tile_n, tiles_per_split):
    def kernel(e0_ref, c0_ref, err_ref, a0_ref, uv_ref, u_ref, v_ref):
        s = pl.program_id(0)          # split (parallel, megacore)
        t = pl.program_id(1)          # tile within split (arbitrary / reduction)

        @pl.when(t == 0)
        def _init():
            uv_ref[...] = jnp.zeros_like(uv_ref)
            u_ref[...] = jnp.zeros_like(u_ref)
            v_ref[...] = jnp.zeros_like(v_ref)

        # Logical (unclamped) column range of this step -> ragged-tail mask.
        start = (s * tiles_per_split + t) * tile_n
        col = lax.broadcasted_iota(jnp.int32, (1, tile_n), 1) + start
        mask = col < n_total                                  # (1, tile_n)

        err = err_ref[...].astype(jnp.float32)                # (O, tile_n)
        a0 = a0_ref[...].astype(jnp.float32)                  # (1, tile_n)
        e0 = e0_ref[...].astype(jnp.float32)                  # (O, 1) shift = errors[0, :]
        c0 = c0_ref[...].astype(jnp.float32)                  # (1, 1) shift = graph_emb[0, 0]

        # Shift, then mask (mask must zero OOB columns of ALL accumulators).
        u = jnp.where(mask, err - e0, 0.0)                    # (O, tile_n)
        v = jnp.where(mask, a0 - c0, 0.0)                     # (1, tile_n)

        # Lane-axis (XLU) reductions; accumulate directly into the resident
        # per-split output blocks.
        uv_ref[...] += jnp.sum(u * v, axis=-1, keepdims=True)[None]   # (1, O, 1)
        u_ref[...] += jnp.sum(u, axis=-1, keepdims=True)[None]        # (1, O, 1)
        v_ref[...] += jnp.sum(v, axis=-1, keepdims=True)[None]        # (1, 1, 1)

    return kernel


def covariance_residual_error(targets, *outputs, max_tile_rows=_DEFAULT_MAX_TILE):
    """Mirrors CovarianceResidualError.forward(targets, *outputs)."""
    _, _, graph_emb, errors = outputs                 # targets & first two outputs unused
    errors = jnp.asarray(errors)
    graph_emb = jnp.asarray(graph_emb)
    n, o = errors.shape

    # Lane-dense layouts: batch (N) on the lane axis; only column 0 of graph_emb
    # is ever used by the module.
    err_t = errors.T                                  # (O, N)
    a0_t = graph_emb[:, 0:1].T                        # (1, N)
    # First-row shifts (covariance is shift invariant -> better f32 numerics).
    e0 = errors[0:1, :].T                             # (O, 1)
    c0 = graph_emb[0:1, 0:1]                          # (1, 1)

    itemsize = max(errors.dtype.itemsize, graph_emb.dtype.itemsize)
    tile_n, tiles_total = _choose_tiling(n, o, itemsize, max_tile_rows)
    num_splits = 2 if tiles_total >= 2 else 1         # feed both TensorCores on v7x
    tiles_per_split = _cdiv(tiles_total, num_splits)

    # Clamp phantom trailing blocks (when tiles don't split evenly) onto a valid
    # block; the in-kernel mask (based on the *logical* column index) zeroes them.
    def col_map(s, t):
        return (0, jnp.minimum(s * tiles_per_split + t, tiles_total - 1))

    uv, su, sv = pl.pallas_call(
        _make_kernel(n, o, tile_n, tiles_per_split),
        out_shape=(
            jax.ShapeDtypeStruct((num_splits, o, 1), jnp.float32),   # S_uv per split
            jax.ShapeDtypeStruct((num_splits, o, 1), jnp.float32),   # S_u  per split
            jax.ShapeDtypeStruct((num_splits, 1, 1), jnp.float32),   # S_v  per split
        ),
        grid_spec=pltpu.PrefetchScalarGridSpec(
            num_scalar_prefetch=0,
            grid=(num_splits, tiles_per_split),
            in_specs=[
                pl.BlockSpec((o, 1), lambda s, t: (0, 0)),           # e0 (resident)
                pl.BlockSpec((1, 1), lambda s, t: (0, 0)),           # c0 (resident)
                pl.BlockSpec((o, tile_n), col_map),                  # errors^T tile
                pl.BlockSpec((1, tile_n), col_map),                  # graph_emb[:,0]^T tile
            ],
            out_specs=(
                pl.BlockSpec((1, o, 1), lambda s, t: (s, 0, 0)),
                pl.BlockSpec((1, o, 1), lambda s, t: (s, 0, 0)),
                pl.BlockSpec((1, 1, 1), lambda s, t: (s, 0, 0)),
            ),
        ),
        compiler_params=pltpu.CompilerParams(
            dimension_semantics=("parallel", "arbitrary")),
    )(e0, c0, err_t, a0_t)

    # Tiny scalar epilogue (O(num_splits*O) flops): combine per-split partials.
    s_uv = jnp.sum(uv[:, :, 0], axis=0)               # (O,)
    s_u = jnp.sum(su[:, :, 0], axis=0)                # (O,)
    s_v = jnp.sum(sv)                                 # scalar
    cov = s_uv - s_u * (s_v / float(n))
    return -jnp.sum(jnp.abs(cov))


def _reference(graph_emb, errors):
    graph_emb = jnp.asarray(graph_emb, jnp.float32)
    errors = jnp.asarray(errors, jnp.float32)
    err_mm = errors - jnp.mean(errors, axis=0, keepdims=True)
    emb_mm = graph_emb - jnp.mean(graph_emb, axis=0, keepdims=True)
    cov = jnp.sum(err_mm * emb_mm[:, 0:1], axis=0)
    return -jnp.sum(jnp.abs(cov))


if __name__ == "__main__":
    key = jax.random.PRNGKey(0)
    k1, k2, k3 = jax.random.split(key, 3)

    # Small shapes consistent with the module: batch=8, error outputs=4, emb dim=32.
    N, O, D = 8, 4, 32
    errors = jax.random.normal(k1, (N, O), dtype=jnp.float32)
    graph_emb = jax.random.normal(k2, (N, D), dtype=jnp.float32) + 3.0   # nonzero mean
    targets = jax.random.normal(k3, (N, O), dtype=jnp.float32)           # unused, as in PyTorch
    dummy = jnp.zeros((N, O), jnp.float32)                               # first two outputs unused

    loss = jax.block_until_ready(
        covariance_residual_error(targets, dummy, dummy, graph_emb, errors))
    ref = _reference(graph_emb, errors)
    assert jnp.allclose(loss, ref, rtol=1e-5, atol=1e-5), (loss, ref)

    # Ragged, multi-tile, two-split path (small forced tiles to exercise masking).
    N2, O2, D2 = 5000, 4, 64
    e2 = jax.random.normal(k3, (N2, O2), dtype=jnp.float32) + 1.5
    g2 = jax.random.normal(k1, (N2, D2), dtype=jnp.float32) - 2.0
    loss2 = jax.block_until_ready(
        covariance_residual_error(None, None, None, g2, e2, max_tile_rows=512))
    ref2 = _reference(g2, e2)
    assert jnp.allclose(loss2, ref2, rtol=1e-4, atol=1e-3), (loss2, ref2)

    print("KERNEL_OK")
</pallas_src>

<mosaic_0001>
module attributes {stable_mosaic.version = 11 : i64} {
  func.func @kernel(%arg0: i32, %arg1: i32, %arg2: memref<4x1xf32, #tpu.memory_space<vmem>>, %arg3: memref<1x1xf32, #tpu.memory_space<vmem>>, %arg4: memref<4x8xf32, #tpu.memory_space<vmem>>, %arg5: memref<1x8xf32, #tpu.memory_space<vmem>>, %arg6: memref<1x4x1xf32, #tpu.memory_space<vmem>>, %arg7: memref<1x4x1xf32, #tpu.memory_space<vmem>>, %arg8: memref<1x1x1xf32, #tpu.memory_space<vmem>>) attributes {dimension_semantics = [#tpu.dimension_semantics<parallel>, #tpu.dimension_semantics<arbitrary>], iteration_bounds = array<i64: 1, 1>, scalar_prefetch = 0 : i64, scratch_operands = 0 : i64, tpu.core_type = #tpu.core_type<tc>, window_params = [{pipeline_mode = #tpu.pipeline_mode<synchronous>, transform_indices = @transform_0, window_bounds = array<i64: 4, 1>}, {pipeline_mode = #tpu.pipeline_mode<synchronous>, transform_indices = @transform_1, window_bounds = array<i64: 1, 1>}, {transform_indices = @transform_2, window_bounds = array<i64: 4, 8>}, {transform_indices = @transform_3, window_bounds = array<i64: 1, 8>}, {transform_indices = @transform_4, window_bounds = array<i64: 1, 4, 1>}, {transform_indices = @transform_5, window_bounds = array<i64: 1, 4, 1>}, {transform_indices = @transform_6, window_bounds = array<i64: 1, 1, 1>}]} {
    %c0_i32 = arith.constant 0 : i32
    %0 = arith.cmpi eq, %arg1, %c0_i32 : i32
    %1 = arith.extui %0 : i1 to i32
    %c0_i32_0 = arith.constant 0 : i32
    %2 = arith.cmpi ne, %1, %c0_i32_0 : i32
    scf.if %2 {
      %cst_31 = arith.constant 0.000000e+00 : f32
      %45 = vector.broadcast %cst_31 : f32 to vector<1x4x1xf32>
      %c0_32 = arith.constant 0 : index
      %c0_33 = arith.constant 0 : index
      %c0_34 = arith.constant 0 : index
      %46 = vector.load %arg6[%c0_32, %c0_33, %c0_34] : memref<1x4x1xf32, #tpu.memory_space<vmem>>, vector<1x4x1xf32>
      tpu.vector_store %arg6[%c0_32, %c0_33, %c0_34], %45 {strides = array<i32>} : memref<1x4x1xf32, #tpu.memory_space<vmem>>, vector<1x4x1xf32>,
      %cst_35 = arith.constant 0.000000e+00 : f32
      %47 = vector.broadcast %cst_35 : f32 to vector<1x4x1xf32>
      %c0_36 = arith.constant 0 : index
      %c0_37 = arith.constant 0 : index
      %c0_38 = arith.constant 0 : index
      %48 = vector.load %arg7[%c0_36, %c0_37, %c0_38] : memref<1x4x1xf32, #tpu.memory_space<vmem>>, vector<1x4x1xf32>
      tpu.vector_store %arg7[%c0_36, %c0_37, %c0_38], %47 {strides = array<i32>} : memref<1x4x1xf32, #tpu.memory_space<vmem>>, vector<1x4x1xf32>,
      %cst_39 = arith.constant 0.000000e+00 : f32
      %49 = vector.broadcast %cst_39 : f32 to vector<1x1x1xf32>
      %c0_40 = arith.constant 0 : index
      %c0_41 = arith.constant 0 : index
      %c0_42 = arith.constant 0 : index
      %50 = vector.load %arg8[%c0_40, %c0_41, %c0_42] : memref<1x1x1xf32, #tpu.memory_space<vmem>>, vector<1x1x1xf32>
      tpu.vector_store %arg8[%c0_40, %c0_41, %c0_42], %49 {strides = array<i32>} : memref<1x1x1xf32, #tpu.memory_space<vmem>>, vector<1x1x1xf32>,
    } else {
    }
    %c1_i32 = arith.constant 1 : i32
    %3 = arith.muli %arg0, %c1_i32 : i32
    %4 = arith.addi %3, %arg1 : i32
    %c8_i32 = arith.constant 8 : i32
    %5 = arith.muli %4, %c8_i32 : i32
    %6 = tpu.iota {dimensions = array<i32: 1>} : vector<1x8xi32>
    %7 = vector.broadcast %5 : i32 to vector<1x8xi32>
    %8 = arith.addi %6, %7 : vector<1x8xi32>
    %c8_i32_1 = arith.constant 8 : i32
    %9 = vector.broadcast %c8_i32_1 : i32 to vector<1x8xi32>
    %10 = arith.cmpi slt, %8, %9 : vector<1x8xi32>
    %c0 = arith.constant 0 : index
    %c0_2 = arith.constant 0 : index
    %11 = vector.load %arg4[%c0, %c0_2] : memref<4x8xf32, #tpu.memory_space<vmem>>, vector<4x8xf32>
    %c0_3 = arith.constant 0 : index
    %c0_4 = arith.constant 0 : index
    %12 = vector.load %arg5[%c0_3, %c0_4] : memref<1x8xf32, #tpu.memory_space<vmem>>, vector<1x8xf32>
    %c0_5 = arith.constant 0 : index
    %c0_6 = arith.constant 0 : index
    %13 = vector.load %arg2[%c0_5, %c0_6] : memref<4x1xf32, #tpu.memory_space<vmem>>, vector<4x1xf32>
    %c0_7 = arith.constant 0 : index
    %c0_8 = arith.constant 0 : index
    %14 = vector.load %arg3[%c0_7, %c0_8] : memref<1x1xf32, #tpu.memory_space<vmem>>, vector<1x1xf32>
    %15 = vector.broadcast %13 : vector<4x1xf32> to vector<4x8xf32>
    %16 = arith.subf %11, %15 : vector<4x8xf32>
    %cst = arith.constant 0.000000e+00 : f32
    %17 = vector.shape_cast %10 : vector<1x8xi1> to vector<1x8xi1>
    %18 = vector.broadcast %17 : vector<1x8xi1> to vector<4x8xi1>
    %19 = vector.broadcast %cst : f32 to vector<4x8xf32>
    %20 = arith.select %18, %16, %19 : vector<4x8xi1>, vector<4x8xf32>
    %21 = vector.broadcast %14 : vector<1x1xf32> to vector<1x8xf32>
    %22 = arith.subf %12, %21 : vector<1x8xf32>
    %cst_9 = arith.constant 0.000000e+00 : f32
    %23 = vector.broadcast %cst_9 : f32 to vector<1x8xf32>
    %24 = arith.select %10, %22, %23 : vector<1x8xi1>, vector<1x8xf32>
    %c0_10 = arith.constant 0 : index
    %c0_11 = arith.constant 0 : index
    %c0_12 = arith.constant 0 : index
    %25 = vector.load %arg6[%c0_10, %c0_11, %c0_12] : memref<1x4x1xf32, #tpu.memory_space<vmem>>, vector<1x4x1xf32>
    %26 = vector.broadcast %24 : vector<1x8xf32> to vector<4x8xf32>
    %27 = arith.mulf %20, %26 : vector<4x8xf32>
    %cst_13 = arith.constant dense<0.000000e+00> : vector<4xf32>
    %28 = vector.multi_reduction <add>, %27, %cst_13 [1] : vector<4x8xf32> to vector<4xf32>
    %29 = vector.shape_cast %28 : vector<4xf32> to vector<4x1xf32>
    %30 = vector.shape_cast %29 : vector<4x1xf32> to vector<1x4x1xf32>
    %31 = arith.addf %25, %30 : vector<1x4x1xf32>
    %c0_14 = arith.constant 0 : index
    %c0_15 = arith.constant 0 : index
    %c0_16 = arith.constant 0 : index
    %32 = vector.load %arg6[%c0_14, %c0_15, %c0_16] : memref<1x4x1xf32, #tpu.memory_space<vmem>>, vector<1x4x1xf32>
    tpu.vector_store %arg6[%c0_14, %c0_15, %c0_16], %31 {strides = array<i32>} : memref<1x4x1xf32, #tpu.memory_space<vmem>>, vector<1x4x1xf32>,
    %c0_17 = arith.constant 0 : index
    %c0_18 = arith.constant 0 : index
    %c0_19 = arith.constant 0 : index
    %33 = vector.load %arg7[%c0_17, %c0_18, %c0_19] : memref<1x4x1xf32, #tpu.memory_space<vmem>>, vector<1x4x1xf32>
    %cst_20 = arith.constant dense<0.000000e+00> : vector<4xf32>
    %34 = vector.multi_reduction <add>, %20, %cst_20 [1] : vector<4x8xf32> to vector<4xf32>
    %35 = vector.shape_cast %34 : vector<4xf32> to vector<4x1xf32>
    %36 = vector.shape_cast %35 : vector<4x1xf32> to vector<1x4x1xf32>
    %37 = arith.addf %33, %36 : vector<1x4x1xf32>
    %c0_21 = arith.constant 0 : index
    %c0_22 = arith.constant 0 : index
    %c0_23 = arith.constant 0 : index
    %38 = vector.load %arg7[%c0_21, %c0_22, %c0_23] : memref<1x4x1xf32, #tpu.memory_space<vmem>>, vector<1x4x1xf32>
    tpu.vector_store %arg7[%c0_21, %c0_22, %c0_23], %37 {strides = array<i32>} : memref<1x4x1xf32, #tpu.memory_space<vmem>>, vector<1x4x1xf32>,
    %c0_24 = arith.constant 0 : index
    %c0_25 = arith.constant 0 : index
    %c0_26 = arith.constant 0 : index
    %39 = vector.load %arg8[%c0_24, %c0_25, %c0_26] : memref<1x1x1xf32, #tpu.memory_space<vmem>>, vector<1x1x1xf32>
    %cst_27 = arith.constant dense<0.000000e+00> : vector<1xf32>
    %40 = vector.multi_reduction <add>, %24, %cst_27 [1] : vector<1x8xf32> to vector<1xf32>
    %41 = vector.shape_cast %40 : vector<1xf32> to vector<1x1xf32>
    %42 = vector.shape_cast %41 : vector<1x1xf32> to vector<1x1x1xf32>
    %43 = arith.addf %39, %42 : vector<1x1x1xf32>
    %c0_28 = arith.constant 0 : index
    %c0_29 = arith.constant 0 : index
    %c0_30 = arith.constant 0 : index
    %44 = vector.load %arg8[%c0_28, %c0_29, %c0_30] : memref<1x1x1xf32, #tpu.memory_space<vmem>>, vector<1x1x1xf32>
    tpu.vector_store %arg8[%c0_28, %c0_29, %c0_30], %43 {strides = array<i32>} : memref<1x1x1xf32, #tpu.memory_space<vmem>>, vector<1x1x1xf32>,
    return
  }
  func.func @transform_0(%arg0: i32, %arg1: i32) -> (i32, i32) {
    %c0_i32 = arith.constant 0 : i32
    %c0_i32_0 = arith.constant 0 : i32
    %c0_i32_1 = arith.constant 0 : i32
    return %c0_i32, %c0_i32_0 : i32, i32
  }
  func.func @transform_1(%arg0: i32, %arg1: i32) -> (i32, i32) {
    %c0_i32 = arith.constant 0 : i32
    %c0_i32_0 = arith.constant 0 : i32
    %c0_i32_1 = arith.constant 0 : i32
    return %c0_i32, %c0_i32_0 : i32, i32
  }
  func.func @transform_2(%arg0: i32, %arg1: i32) -> (i32, i32) {
    %c1_i32 = arith.constant 1 : i32
    %0 = arith.muli %arg0, %c1_i32 : i32
    %1 = arith.addi %0, %arg1 : i32
    %c0_i32 = arith.constant 0 : i32
    %2 = arith.minsi %1, %c0_i32 : i32
    %c0_i32_0 = arith.constant 0 : i32
    %c0_i32_1 = arith.constant 0 : i32
    return %c0_i32_0, %2 : i32, i32
  }
  func.func @transform_3(%arg0: i32, %arg1: i32) -> (i32, i32) {
    %c1_i32 = arith.constant 1 : i32
    %0 = arith.muli %arg0, %c1_i32 : i32
    %1 = arith.addi %0, %arg1 : i32
    %c0_i32 = arith.constant 0 : i32
    %2 = arith.minsi %1, %c0_i32 : i32
    %c0_i32_0 = arith.constant 0 : i32
    %c0_i32_1 = arith.constant 0 : i32
    return %c0_i32_0, %2 : i32, i32
  }
  func.func @transform_4(%arg0: i32, %arg1: i32) -> (i32, i32, i32) {
    %c0_i32 = arith.constant 0 : i32
    %c0_i32_0 = arith.constant 0 : i32
    %c0_i32_1 = arith.constant 0 : i32
    return %arg0, %c0_i32, %c0_i32_0 : i32, i32, i32
  }
  func.func @transform_5(%arg0: i32, %arg1: i32) -> (i32, i32, i32) {
    %c0_i32 = arith.constant 0 : i32
    %c0_i32_0 = arith.constant 0 : i32
    %c0_i32_1 = arith.constant 0 : i32
    return %arg0, %c0_i32, %c0_i32_0 : i32, i32, i32
  }
  func.func @transform_6(%arg0: i32, %arg1: i32) -> (i32, i32, i32) {
    %c0_i32 = arith.constant 0 : i32
    %c0_i32_0 = arith.constant 0 : i32
    %c0_i32_1 = arith.constant 0 : i32
    return %arg0, %c0_i32, %c0_i32_0 : i32, i32, i32
  }
}

</mosaic_0001>

<llo_original>
// kernel: tpu_custom_call.1
$region0: #{tpu_custom_call.1}
  #allocation0 [shape = 'u32[]', space=smem, size = 0x4, offset = 0x4, fixed_abs, tag = 'smem constant byte address 0x4 - core index']
  #allocation1 [shape = 'u32[144,128]{1,0:T(1,128)}', space=vmem, size = 0x12000, scoped, tag = 'internal scratch']
  #allocation2 [shape = 'f32[1,1]{1,0:T(1,128)S(1)}', space=vmem, size = 0x200, scoped, tag = 'scoped memory for tpu_custom_call.1']
  %s0 = inlined_call_operand.vmem [shape: f32[4,1], index: 0, kind: input, shape index: {}]
  %s1 = inlined_call_operand.<no memory space> [shape: f32[1,1], index: 1, kind: input, shape index: {}]
  %s2 = inlined_call_operand.vmem [shape: f32[4,8], index: 2, kind: input, shape index: {}]
  %s3 = inlined_call_operand.vmem [shape: f32[1,8], index: 3, kind: input, shape index: {}]
  %s4 = inlined_call_operand.vmem [shape: f32[1,4,1], index: 4, kind: output, shape index: {0}]
  %s5 = inlined_call_operand.vmem [shape: f32[1,4,1], index: 5, kind: output, shape index: {1}]
  %s6 = inlined_call_operand.hbm [shape: f32[1,1,1], index: 6, kind: output, shape index: {2}]
  %7 = xla_tuple %s4, %s5, %s6
  %s8 = sld [smem:[#allocation0]]
  $region46: #{tpu_custom_call.1} parent=0
    _
  %s10 = ssub.s32 1, %s8
  %s11 = scalar_select 0, %s10, %s8
  %v12 = vstv %s1
  %13 = vst [vmem:[#allocation2] sm:$0x1] %v12
  $region1: #{tpu_custom_call.1} parent=0
    #allocation3 [shape = 'u8[512]{0}', space=vmem, size = 0x400, scoped, tag = 'output window, operand 2, single buffered']
    #allocation4 [shape = 's32[1]{0}', space=sflag, size = 0x4, scoped, tag = 'scoped memory for tpu_custom_call.1']
    %14 = vsyncpa [#allocation4], 0
    // Predicated region
    $region2: #{tpu_custom_call.1} parent=1 // pred_check
      _
    $region3: #{tpu_custom_call.1} parent=1 // pred_check_branch
      %16 = sbr.rel (0) target = $region5
    $region4: #{tpu_custom_call.1} parent=1 // pred_region
      _
    $region5: #{tpu_custom_call.1} parent=1 // pred_fallthru
      _
    // Predicated region
    $region6: #{tpu_custom_call.1} parent=1 // pred_check
      _
    $region7: #{tpu_custom_call.1} parent=1 // pred_check_branch
      %18 = sbr.rel (0) target = $region9
    $region8: #{tpu_custom_call.1} parent=1 // pred_region
      _
    $region9: #{tpu_custom_call.1} parent=1 // pred_fallthru
      _
    // Predicated region
    $region10: #{tpu_custom_call.1} parent=1 // pred_check
      _
    $region11: #{tpu_custom_call.1} parent=1 // pred_check_branch
      %20 = sbr.rel (0) target = $region13
    $region12: #{tpu_custom_call.1} parent=1 // pred_region
      %s21 = sadd.s32 0, 0
      %p22 = scmp.lt.s32.totalorder %s21, 0
      %s23 = scalar_select %p22, %s21, 0
      %p24 = scmp.lt.s32.totalorder %s23, 0
      %s25 = scalar_select %p24, %s23, 0
      %s26 = smul.addr %s25, 4
      %s27 = scalar_lea.vmem %s2, %s26
      %s28 = sadd.s32 0, 0
      %p29 = scmp.lt.s32.totalorder %s28, 0
      %s30 = scalar_select %p29, %s28, 0
    $region13: #{tpu_custom_call.1} parent=1 // pred_fallthru
      _
    // Predicated region
    $region14: #{tpu_custom_call.1} parent=1 // pred_check
      _
    $region15: #{tpu_custom_call.1} parent=1 // pred_check_branch
      %32 = sbr.rel (0) target = $region17
    $region16: #{tpu_custom_call.1} parent=1 // pred_region
      %s33 = sadd.s32 0, 0
      %p34 = scmp.lt.s32.totalorder %s33, 0
      %s35 = scalar_select %p34, %s33, 0
      %p36 = scmp.lt.s32.totalorder %s35, 0
      %s37 = scalar_select %p36, %s35, 0
      %s38 = scalar_lea.vmem %s3, %s37
      %s39 = sadd.s32 0, 0
      %p40 = scmp.lt.s32.totalorder %s39, 0
      %s41 = scalar_select %p40, %s39, 0
    $region17: #{tpu_custom_call.1} parent=1 // pred_fallthru
      _
    %s42 = sadd.s32 0, 0
    %p43 = scmp.lt.s32.totalorder %s42, 0
    %s44 = scalar_select %p43, %s42, 0
    %p45 = scmp.lt.s32.totalorder %s44, 0
    %s46 = scalar_select %p45, %s44, 0
    %s47 = smul.addr %s46, 4
    %s48 = scalar_lea.vmem %s2, %s47
    %s49 = sadd.s32 0, 0
    %p50 = scmp.lt.s32.totalorder %s49, 0
    %s51 = scalar_select %p50, %s49, 0
    %p52 = scmp.lt.s32.totalorder %s51, 0
    %s53 = scalar_select %p52, %s51, 0
    %s54 = scalar_lea.vmem %s3, %s53
    %s55 = sadd.s32 0, 0
    %p56 = scmp.lt.s32.totalorder %s55, 0
    %s57 = scalar_select %p56, %s55, 0
    %p58 = scmp.lt.s32.totalorder %s57, 0
    %s59 = scalar_select %p58, %s57, 0
    %s60 = smul.addr %s59, 4
    %s61 = scalar_lea.vmem %s2, %s60
    %s62 = sadd.s32 0, 0
    %p63 = scmp.lt.s32.totalorder %s62, 0
    %s64 = scalar_select %p63, %s62, 0
    %s65 = sadd.s32 0, 0
    %p66 = scmp.lt.s32.totalorder %s65, 0
    %s67 = scalar_select %p66, %s65, 0
    %p68 = scmp.lt.s32.totalorder %s67, 0
    %s69 = scalar_select %p68, %s67, 0
    %s70 = scalar_lea.vmem %s3, %s69
    %s71 = sadd.s32 0, 0
    %p72 = scmp.lt.s32.totalorder %s71, 0
    %s73 = scalar_select %p72, %s71, 0
    %p74 = scmp.eq.s32.totalorder 0, 0
    // Predicated region
    $region18: #{tpu_custom_call.1} parent=1 // pred_check
      %p75 = pneg %p74
    $region19: #{tpu_custom_call.1} parent=1 // pred_check_branch
      %77 = sbr.rel (%p75) target = $region21
    $region20: #{tpu_custom_call.1} parent=1 // pred_region
      %vm78 = vcmask 3072
      %79 = vst.msk [vmem:[%s4] sm:$0xf] %vm78, 0.0
      %80 = vst.msk [vmem:[%s5] sm:$0xf] %vm78, 0.0
      %vm81 = vcmask 0
      %82 = vst.msk [vmem:[#allocation3] sm:$0x1] %vm81, 0.0
    $region21: #{tpu_custom_call.1} parent=1 // pred_fallthru
      _
    %s83 = sadd.s32 0, 0
    %s84 = smul.u32 %s83, 8
    %v85 = vlaneseq
    %v86 = vand.u32 %v85, 127
    %v87 = vstv %s84
    %v88 = vadd.s32 %v86, %v87
    %vm89 = vcmp.lt.s32.totalorder %v88, 8
    %v90 = vld [vmem:[%s61] sm:$0xf]
    %v91 = vld [vmem:[%s70] sm:$0x1]
    %v92 = vld [vmem:[%s0] sm:$0xf]
    %v93 = vld [vmem:[#allocation2] sm:$0x1]
    %95 = vset.pattern.permute.xlu0 0
    %96 = vperm.xlu0 %95, %v92
    %v97 = vpop.permute.xlu0 %96
    %v99 = vsub.f32 %v90, %v97
    %v100 = vsel %vm89, 1, 0
    %vm101 = vcmp.eq.s32.totalorder %v100, 1
    %v102 = vsel %vm101, %v99, 0.0
    %104 = vset.pattern.permute.xlu0 0
    %105 = vperm.xlu0 %104, %v93
    %v106 = vpop.permute.xlu0 %105
    %v108 = vlaneseq
    %v109 = vshrl.u32 %v108, 7
    %v110 = vsub.s32 0, %v109
    %v111 = vrot.slane %v106, %v110
    %v112 = vsub.f32 %v91, %v111
    %v113 = vsel %vm89, %v112, 0.0
    %v114 = vld [vmem:[%s4] sm:$0xf]
    %v115 = vlaneseq
    %v116 = vshrl.u32 %v115, 7
    %v117 = vsub.s32 0, %v116
    %v118 = vrot.slane %v113, %v117
    %v119 = vmul.f32 %v102, %v118
    %vm120 = vcmask 60416
    %v121 = vsel %vm120, %v119, 0.0
    %122 = vadd.xlane.f32.xlu0 %v121
    %v123 = vpop.xlane.xlu0 %122
    %v124 = vadd.f32 %v114, %v123
    %vm125 = vcmask 3072
    %126 = vst.msk [vmem:[%s4] sm:$0xf] %vm125, %v124
    %v127 = vld [vmem:[%s5] sm:$0xf]
    %v128 = vsel %vm120, %v102, 0.0
    %129 = vadd.xlane.f32.xlu0 %v128
    %v130 = vpop.xlane.xlu0 %129
    %v131 = vadd.f32 %v127, %v130
    %132 = vst.msk [vmem:[%s5] sm:$0xf] %vm125, %v131
    %v133 = vld [vmem:[#allocation3] sm:$0x1]
    %vm134 = vcmask 57344
    %v135 = vsel %vm134, %v113, 0.0
    %136 = vadd.xlane.f32.xlu0 %v135
    %v137 = vpop.xlane.xlu0 %136
    %v138 = vadd.f32 %v133, %v137
    %vm139 = vcmask 0
    %140 = vst.msk [vmem:[#allocation3] sm:$0x1] %vm139, %v138
    // Predicated region
    $region22: #{tpu_custom_call.1} parent=1 // pred_check
      _
    $region23: #{tpu_custom_call.1} parent=1 // pred_check_branch
      %142 = sbr.rel (0) target = $region25
    $region24: #{tpu_custom_call.1} parent=1 // pred_region
      _
    $region25: #{tpu_custom_call.1} parent=1 // pred_fallthru
      _
    // Predicated region
    $region26: #{tpu_custom_call.1} parent=1 // pred_check
      _
    $region27: #{tpu_custom_call.1} parent=1 // pred_check_branch
      %144 = sbr.rel (0) target = $region29
    $region28: #{tpu_custom_call.1} parent=1 // pred_region
      _
    $region29: #{tpu_custom_call.1} parent=1 // pred_fallthru
      _
    // Predicated region
    $region30: #{tpu_custom_call.1} parent=1 // pred_check
      _
    $region31: #{tpu_custom_call.1} parent=1 // pred_check_branch
      %146 = sbr.rel (0) target = $region33
    $region32: #{tpu_custom_call.1} parent=1 // pred_region
      %s148 = ssub.s32 16, 16
      %149 = vsyncadd [#allocation4], %s148
      %s151 = sshll.u32 [#allocation3], 4
      %s152 = int_to_ptr.vmem [resolvable:$true] %s151
      %154 = dma.vmem_to_hbm [thread:$0]  %s152, 16, %s6, [#allocation4]
    $region33: #{tpu_custom_call.1} parent=1 // pred_fallthru
      _
    // Predicated region
    $region34: #{tpu_custom_call.1} parent=1 // pred_check
      _
    $region35: #{tpu_custom_call.1} parent=1 // pred_check_branch
      %156 = sbr.rel (0) target = $region37
    $region36: #{tpu_custom_call.1} parent=1 // pred_region
      _
    $region37: #{tpu_custom_call.1} parent=1 // pred_fallthru
      _
    // Predicated region
    $region38: #{tpu_custom_call.1} parent=1 // pred_check
      _
    $region39: #{tpu_custom_call.1} parent=1 // pred_check_branch
      %158 = sbr.rel (0) target = $region41
    $region40: #{tpu_custom_call.1} parent=1 // pred_region
      _
    $region41: #{tpu_custom_call.1} parent=1 // pred_fallthru
      _
    // Predicated region
    $region42: #{tpu_custom_call.1} parent=1 // pred_check
      _
    $region43: #{tpu_custom_call.1} parent=1 // pred_check_branch
      %160 = sbr.rel (0) target = $region45
    $region44: #{tpu_custom_call.1} parent=1 // pred_region
      %161 = dma.done [#allocation4], 16
    $region45: #{tpu_custom_call.1} parent=1 // pred_fallthru
      _
    %162 = vsyncpa [#allocation4], 1

</llo_original>
